<compile_context>
chip_gen: v6e
topology: v6e:2x2x1
jax: 0.10.0
libtpu: 0.0.40
codegen_flags: <defaults>
</compile_context>

<pallas_src>
import math
import functools

import jax
import jax.numpy as jnp
from jax.experimental import pallas as pl
from jax.experimental.pallas import tpu as pltpu


# ----------------------------------------------------------------------------
# helpers
# ----------------------------------------------------------------------------
def _layernorm(x, gamma, beta, eps):
    mu = jnp.mean(x, axis=-1, keepdims=True)
    xc = x - mu
    var = jnp.mean(xc * xc, axis=-1, keepdims=True)
    return xc * jax.lax.rsqrt(var + eps) * gamma + beta


def _l_tile(L, preferred=256):
    # Full block for small L (block dim == array dim is always legal); a fixed
    # 8-aligned tile for large L with a cdiv grid (Pallas pads/clips the tail).
    return L if L <= preferred else preferred


_VMEM_LIMIT = 64 * 1024 * 1024  # fits every generation's physical VMEM


# ----------------------------------------------------------------------------
# Kernel 1: fused Q/K/V projection, (L,N,E) inputs -> batch-major (N,L,E)
#           outputs (layout change done by BlockSpec addressing + stores,
#           not by a wrapper transpose).  Query scale is folded into Wq/bq.
# ----------------------------------------------------------------------------
def _qkv_proj_kernel(q_ref, k_ref, v_ref, wq_ref, wk_ref, wv_ref,
                     bq_ref, bk_ref, bv_ref, qo_ref, ko_ref, vo_ref):
    # q_ref/k_ref/v_ref: (tl, N, E) slabs of the (L, N, E) inputs
    # qo_ref/ko_ref/vo_ref: (N, tl, E) slabs of the (N, L, E) outputs
    n_batch = q_ref.shape[1]
    wq = wq_ref[...]; wk = wk_ref[...]; wv = wv_ref[...]   # (E, E), (In, Out)
    bq = bq_ref[...]; bk = bk_ref[...]; bv = bv_ref[...]   # (1, E)
    for n in range(n_batch):                               # static unroll
        qo_ref[n] = jnp.dot(q_ref[:, n, :], wq,
                            preferred_element_type=jnp.float32) + bq
        ko_ref[n] = jnp.dot(k_ref[:, n, :], wk,
                            preferred_element_type=jnp.float32) + bk
        vo_ref[n] = jnp.dot(v_ref[:, n, :], wv,
                            preferred_element_type=jnp.float32) + bv
    # TODO(synk): optionally cast matmul operands to bf16 (f32 accumulation)
    # for ~2x MXU throughput on v5e/v6e/v7x at slightly reduced precision.


def qkv_proj_pallas(q, k, v, wq_t, wk_t, wv_t, bq, bk, bv):
    L, N, E = q.shape
    tl = _l_tile(L)
    grid = (pl.cdiv(L, tl),)
    in_row = pl.BlockSpec((tl, N, E), lambda i: (i, 0, 0))
    out_row = pl.BlockSpec((N, tl, E), lambda i: (0, i, 0))
    wspec = pl.BlockSpec((E, E), lambda i: (0, 0))   # constant index -> resident
    bspec = pl.BlockSpec((1, E), lambda i: (0, 0))
    out = jax.ShapeDtypeStruct((N, L, E), jnp.float32)
    return pl.pallas_call(
        _qkv_proj_kernel,
        out_shape=(out, out, out),
        grid=grid,
        in_specs=[in_row, in_row, in_row, wspec, wspec, wspec,
                  bspec, bspec, bspec],
        out_specs=(out_row, out_row, out_row),
        compiler_params=pltpu.CompilerParams(
            dimension_semantics=("parallel",),
            vmem_limit_bytes=_VMEM_LIMIT),
    )(q, k, v, wq_t, wk_t, wv_t,
      bq.reshape(1, E), bk.reshape(1, E), bv.reshape(1, E))


# ----------------------------------------------------------------------------
# Kernel 2: attention core -- one batch per grid step, ALL heads per step,
#           additive key-padding bias, softmax normalization via reciprocal.
# ----------------------------------------------------------------------------
def _mha_core_kernel(q_ref, k_ref, v_ref, bias_ref, o_ref, *, heads):
    q = q_ref[0]                 # (L, E) -- query already scaled by 1/sqrt(Dh)
    k = k_ref[0]                 # (L, E)
    v = v_ref[0]                 # (L, E)
    bias = bias_ref[0]           # (1, L) additive key-padding bias (0 / -1e30)
    dh = q.shape[-1] // heads

    ctx = []
    for h in range(heads):       # static unroll over heads
        sl = slice(h * dh, (h + 1) * dh)
        qh, kh, vh = q[:, sl], k[:, sl], v[:, sl]
        # scores = qh @ kh^T via last-dim contraction (no transpose)
        s = jax.lax.dot_general(qh, kh, (((1,), (1,)), ((), ())),
                                preferred_element_type=jnp.float32)   # (L, L)
        s = s + bias
        m = jnp.max(s, axis=-1, keepdims=True)
        p = jnp.exp(s - m)
        inv = pl.reciprocal(jnp.sum(p, axis=-1, keepdims=True), approx=True)
        # TODO(synk): attention-weight dropout is identity (eval-mode forward).
        ctx.append(jnp.dot(p, vh, preferred_element_type=jnp.float32) * inv)
    # single lane-dense store of the merged heads
    o_ref[0] = jnp.concatenate(ctx, axis=-1)
    # TODO(synk): for long sequences, tile the KV axis (flash-style online
    # softmax with m/l/acc scratch) instead of materializing (L, L) scores.
    # NOTE: fully-masked query rows give uniform 1/L weights here, whereas
    # torch MultiheadAttention would produce NaN for that degenerate case.


def mha_attention_pallas(qp, kp, vp, bias3, heads):
    N, L, E = qp.shape
    xspec = pl.BlockSpec((1, L, E), lambda b: (b, 0, 0))
    bspec = pl.BlockSpec((1, 1, L), lambda b: (b, 0, 0))
    return pl.pallas_call(
        functools.partial(_mha_core_kernel, heads=heads),
        out_shape=jax.ShapeDtypeStruct((N, L, E), jnp.float32),
        grid=(N,),
        in_specs=[xspec, xspec, xspec, bspec],
        out_specs=xspec,
        compiler_params=pltpu.CompilerParams(
            dimension_semantics=("parallel",),
            vmem_limit_bytes=_VMEM_LIMIT),
    )(qp, kp, vp, bias3)


# ----------------------------------------------------------------------------
# Kernel 3: out-proj + residual + LN1 + FeedForward(ReLU) + residual + LN2.
#           Consumes batch-major attention + (L,N,E) residual, writes (L,N,E)
#           output directly (no wrapper-side merge transpose).
# ----------------------------------------------------------------------------
def _post_attn_kernel(attn_ref, res_ref, wo_ref, bo_ref, g1_ref, be1_ref,
                      w1_ref, b1_ref, w2_ref, b2_ref, g2_ref, be2_ref,
                      o_ref, *, eps):
    # attn_ref: (N, tl, E)   res_ref/o_ref: (tl, N, E)
    n_batch = attn_ref.shape[0]
    wo = wo_ref[...]; bo = bo_ref[...]
    g1 = g1_ref[...]; be1 = be1_ref[...]
    w1 = w1_ref[...]; b1 = b1_ref[...]
    w2 = w2_ref[...]; b2 = b2_ref[...]
    g2 = g2_ref[...]; be2 = be2_ref[...]
    for n in range(n_batch):                               # static unroll
        x = jnp.dot(attn_ref[n], wo, preferred_element_type=jnp.float32) + bo
        x = x + res_ref[:, n, :]
        x = _layernorm(x, g1, be1, eps)
        h = jnp.maximum(jnp.dot(x, w1, preferred_element_type=jnp.float32) + b1,
                        0.0)
        # TODO(synk): FeedForward dropout is identity (eval-mode forward).
        y = x + jnp.dot(h, w2, preferred_element_type=jnp.float32) + b2
        o_ref[:, n, :] = _layernorm(y, g2, be2, eps)


def post_attn_pallas(attn, res, wo_t, bo, g1, be1, w1_t, b1, w2_t, b2,
                     g2, be2, eps):
    N, L, E = attn.shape
    F = w1_t.shape[1]
    tl = _l_tile(L)
    grid = (pl.cdiv(L, tl),)
    attn_spec = pl.BlockSpec((N, tl, E), lambda i: (0, i, 0))
    row_spec = pl.BlockSpec((tl, N, E), lambda i: (i, 0, 0))
    full = lambda shp: pl.BlockSpec(shp, lambda i: (0, 0))
    # Weights use constant index maps (resident across the row grid).  For very
    # large E/F, single-buffer them (pipeline_mode=pl.Buffered(1)) and/or tile
    # the FFN over an 'arbitrary' F axis to stay inside v7x's 64 MiB VMEM.
    return pl.pallas_call(
        functools.partial(_post_attn_kernel, eps=eps),
        out_shape=jax.ShapeDtypeStruct((L, N, E), jnp.float32),
        grid=grid,
        in_specs=[
            attn_spec, row_spec,
            full((E, E)), full((1, E)),   # Wo^T, bo
            full((1, E)), full((1, E)),   # gamma1, beta1
            full((E, F)), full((1, F)),   # W1^T, b1
            full((F, E)), full((1, E)),   # W2^T, b2
            full((1, E)), full((1, E)),   # gamma2, beta2
        ],
        out_specs=row_spec,
        compiler_params=pltpu.CompilerParams(
            dimension_semantics=("parallel",),
            vmem_limit_bytes=_VMEM_LIMIT),
    )(attn, res, wo_t, bo.reshape(1, E), g1.reshape(1, E), be1.reshape(1, E),
      w1_t, b1.reshape(1, F), w2_t, b2.reshape(1, E),
      g2.reshape(1, E), be2.reshape(1, E))


# ----------------------------------------------------------------------------
# Module wrapper (mirrors the PyTorch Transformer block, eval-mode forward)
# ----------------------------------------------------------------------------
class Transformer:
    def __init__(self, d_model, heads, key, d_ff=128, eps=1e-5):
        assert d_model % heads == 0
        self.d_model = d_model
        self.heads = heads
        self.head_dim = d_model // heads
        self.d_ff = d_ff
        self.eps = eps
        self.scale = 1.0 / math.sqrt(self.head_dim)
        ks = jax.random.split(key, 6)
        E, F = d_model, d_ff

        def xavier(k, shape):
            bound = math.sqrt(6.0 / (shape[0] + shape[1]))
            return jax.random.uniform(k, shape, jnp.float32, -bound, bound)

        def torch_linear(k, out_f, in_f):
            k1, k2 = jax.random.split(k)
            bound = 1.0 / math.sqrt(in_f)
            w = jax.random.uniform(k1, (out_f, in_f), jnp.float32, -bound, bound)
            b = jax.random.uniform(k2, (out_f,), jnp.float32, -bound, bound)
            return w, b

        # All weights stored PRE-TRANSPOSED to (In, Out) for natural MXU layout.
        self.wq_t = xavier(ks[0], (E, E)).T
        self.wk_t = xavier(ks[1], (E, E)).T
        self.wv_t = xavier(ks[2], (E, E)).T
        self.wo_t = xavier(ks[3], (E, E)).T
        self.bq = jnp.zeros((E,), jnp.float32)
        self.bk = jnp.zeros((E,), jnp.float32)
        self.bv = jnp.zeros((E,), jnp.float32)
        self.bo = jnp.zeros((E,), jnp.float32)
        # Query scale folded into the projection once at init (kernel path).
        self.wq_t_scaled = self.wq_t * self.scale
        self.bq_scaled = self.bq * self.scale
        # FeedForward params
        w1, b1 = torch_linear(ks[4], F, E)
        w2, b2 = torch_linear(ks[5], E, F)
        self.w1_t, self.b1 = w1.T, b1
        self.w2_t, self.b2 = w2.T, b2
        # LayerNorm params
        self.g1 = jnp.ones((E,), jnp.float32)
        self.be1 = jnp.zeros((E,), jnp.float32)
        self.g2 = jnp.ones((E,), jnp.float32)
        self.be2 = jnp.zeros((E,), jnp.float32)

    def forward(self, q, k, v, mask):
        # q, k, v: (L, N, E) (seq, batch, embed); mask: (N, L), True = pad key
        L, N, E = q.shape
        # 1) fused QKV projection -> batch-major (N, L, E), no wrapper transpose
        qp, kp, vp = qkv_proj_pallas(q, k, v,
                                     self.wq_t_scaled, self.wk_t, self.wv_t,
                                     self.bq_scaled, self.bk, self.bv)
        # 2) additive key-padding bias (tiny (N,L) op)
        bias = jnp.where(mask, jnp.float32(-1e30),
                         jnp.float32(0.0)).astype(jnp.float32).reshape(N, 1, L)
        attn = mha_attention_pallas(qp, kp, vp, bias, self.heads)   # (N, L, E)
        # 3) out-proj + residual + LN1 + FFN + residual + LN2 -> (L, N, E)
        return post_attn_pallas(attn, q, self.wo_t, self.bo,
                                self.g1, self.be1, self.w1_t, self.b1,
                                self.w2_t, self.b2, self.g2, self.be2,
                                self.eps)


# ----------------------------------------------------------------------------
# pure-JAX reference (same math, for correctness check)
# ----------------------------------------------------------------------------
def reference_forward(model, q, k, v, mask):
    L, N, E = q.shape
    H, Dh = model.heads, model.head_dim
    lin = lambda x, wt, b: x @ wt + b

    qp = lin(q, model.wq_t, model.bq) * model.scale
    kp = lin(k, model.wk_t, model.bk)
    vp = lin(v, model.wv_t, model.bv)
    split = lambda x: x.reshape(L, N, H, Dh).transpose(1, 2, 0, 3)
    qh, kh, vh = split(qp), split(kp), split(vp)

    scores = jnp.einsum('nhqd,nhkd->nhqk', qh, kh)
    scores = jnp.where(mask.astype(bool)[:, None, None, :],
                       jnp.float32(-1e30), scores)
    p = jax.nn.softmax(scores, axis=-1)
    ctx = jnp.einsum('nhqk,nhkd->nhqd', p, vh)
    ctx = ctx.transpose(2, 0, 1, 3).reshape(L, N, E)

    def ln(x, g, b):
        mu = x.mean(-1, keepdims=True)
        var = ((x - mu) ** 2).mean(-1, keepdims=True)
        return (x - mu) * jax.lax.rsqrt(var + model.eps) * g + b

    x = ln(q + lin(ctx, model.wo_t, model.bo), model.g1, model.be1)
    h = jax.nn.relu(lin(x, model.w1_t, model.b1))
    y = x + lin(h, model.w2_t, model.b2)
    return ln(y, model.g2, model.be2)


# ----------------------------------------------------------------------------
if __name__ == "__main__":
    d_model, heads, seq, batch = 32, 4, 8, 2

    key = jax.random.PRNGKey(0)
    k_mod, kq, kk, kv = jax.random.split(key, 4)

    model = Transformer(d_model, heads, k_mod)

    q = jax.random.normal(kq, (seq, batch, d_model), jnp.float32)
    k = jax.random.normal(kk, (seq, batch, d_model), jnp.float32)
    v = jax.random.normal(kv, (seq, batch, d_model), jnp.float32)
    # key_padding_mask: mask out the last 2 key positions of every batch
    mask = jnp.zeros((batch, seq), jnp.bool_).at[:, -2:].set(True)

    out = model.forward(q, k, v, mask)
    jax.block_until_ready(out)
    assert out.shape == (seq, batch, d_model)

    ref = reference_forward(model, q, k, v, mask)
    max_err = float(jnp.max(jnp.abs(out - ref)))
    # tolerance accounts for the approximate (EUP) reciprocal in the softmax
    assert jnp.allclose(out, ref, atol=1e-2, rtol=1e-2), max_err

    print("KERNEL_OK")
</pallas_src>

<mosaic_0001>
module attributes {stable_mosaic.version = 11 : i64} {
  func.func @_qkv_proj_kernel(%arg0: i32, %arg1: memref<8x2x32xf32, #tpu.memory_space<vmem>>, %arg2: memref<8x2x32xf32, #tpu.memory_space<vmem>>, %arg3: memref<8x2x32xf32, #tpu.memory_space<vmem>>, %arg4: memref<32x32xf32, #tpu.memory_space<vmem>>, %arg5: memref<32x32xf32, #tpu.memory_space<vmem>>, %arg6: memref<32x32xf32, #tpu.memory_space<vmem>>, %arg7: memref<1x32xf32, #tpu.memory_space<vmem>>, %arg8: memref<1x32xf32, #tpu.memory_space<vmem>>, %arg9: memref<1x32xf32, #tpu.memory_space<vmem>>, %arg10: memref<2x8x32xf32, #tpu.memory_space<vmem>>, %arg11: memref<2x8x32xf32, #tpu.memory_space<vmem>>, %arg12: memref<2x8x32xf32, #tpu.memory_space<vmem>>) attributes {dimension_semantics = [#tpu.dimension_semantics<parallel>], iteration_bounds = array<i64: 1>, scalar_prefetch = 0 : i64, scratch_operands = 0 : i64, tpu.core_type = #tpu.core_type<tc>, window_params = [{transform_indices = @transform_0, window_bounds = array<i64: 8, 2, 32>}, {transform_indices = @transform_1, window_bounds = array<i64: 8, 2, 32>}, {transform_indices = @transform_2, window_bounds = array<i64: 8, 2, 32>}, {pipeline_mode = #tpu.pipeline_mode<synchronous>, transform_indices = @transform_3, window_bounds = array<i64: 32, 32>}, {pipeline_mode = #tpu.pipeline_mode<synchronous>, transform_indices = @transform_4, window_bounds = array<i64: 32, 32>}, {pipeline_mode = #tpu.pipeline_mode<synchronous>, transform_indices = @transform_5, window_bounds = array<i64: 32, 32>}, {pipeline_mode = #tpu.pipeline_mode<synchronous>, transform_indices = @transform_6, window_bounds = array<i64: 1, 32>}, {pipeline_mode = #tpu.pipeline_mode<synchronous>, transform_indices = @transform_7, window_bounds = array<i64: 1, 32>}, {pipeline_mode = #tpu.pipeline_mode<synchronous>, transform_indices = @transform_8, window_bounds = array<i64: 1, 32>}, {transform_indices = @transform_9, window_bounds = array<i64: 2, 8, 32>}, {transform_indices = @transform_10, window_bounds = array<i64: 2, 8, 32>}, {transform_indices = @transform_11, window_bounds = array<i64: 2, 8, 32>}]} {
    %c0 = arith.constant 0 : index
    %c0_0 = arith.constant 0 : index
    %0 = vector.load %arg4[%c0, %c0_0] : memref<32x32xf32, #tpu.memory_space<vmem>>, vector<32x32xf32>
    %c0_1 = arith.constant 0 : index
    %c0_2 = arith.constant 0 : index
    %1 = vector.load %arg5[%c0_1, %c0_2] : memref<32x32xf32, #tpu.memory_space<vmem>>, vector<32x32xf32>
    %c0_3 = arith.constant 0 : index
    %c0_4 = arith.constant 0 : index
    %2 = vector.load %arg6[%c0_3, %c0_4] : memref<32x32xf32, #tpu.memory_space<vmem>>, vector<32x32xf32>
    %c0_5 = arith.constant 0 : index
    %c0_6 = arith.constant 0 : index
    %3 = vector.load %arg7[%c0_5, %c0_6] : memref<1x32xf32, #tpu.memory_space<vmem>>, vector<1x32xf32>
    %c0_7 = arith.constant 0 : index
    %c0_8 = arith.constant 0 : index
    %4 = vector.load %arg8[%c0_7, %c0_8] : memref<1x32xf32, #tpu.memory_space<vmem>>, vector<1x32xf32>
    %c0_9 = arith.constant 0 : index
    %c0_10 = arith.constant 0 : index
    %5 = vector.load %arg9[%c0_9, %c0_10] : memref<1x32xf32, #tpu.memory_space<vmem>>, vector<1x32xf32>
    %c0_11 = arith.constant 0 : index
    %c0_12 = arith.constant 0 : index
    %c0_13 = arith.constant 0 : index
    %6 = vector.load %arg1[%c0_11, %c0_12, %c0_13] : memref<8x2x32xf32, #tpu.memory_space<vmem>>, vector<8x1x32xf32>
    %7 = vector.shape_cast %6 : vector<8x1x32xf32> to vector<8x32xf32>
    %cst = arith.constant dense<0.000000e+00> : vector<8x32xf32>
    %8 = tpu.matmul %7, %0, %cst {dimension_numbers = #tpu.dot_dimension_numbers<[1], [0], [0], [1], [0, 0, 1, 1], [], []>} : vector<8x32xf32>, vector<32x32xf32>, vector<8x32xf32> -> vector<8x32xf32>
    %9 = vector.broadcast %3 : vector<1x32xf32> to vector<8x32xf32>
    %10 = arith.addf %8, %9 : vector<8x32xf32>
    %c0_14 = arith.constant 0 : index
    %c0_15 = arith.constant 0 : index
    %c0_16 = arith.constant 0 : index
    %11 = vector.load %arg10[%c0_14, %c0_15, %c0_16] : memref<2x8x32xf32, #tpu.memory_space<vmem>>, vector<1x8x32xf32>
    %12 = vector.shape_cast %11 : vector<1x8x32xf32> to vector<8x32xf32>
    %13 = vector.shape_cast %10 : vector<8x32xf32> to vector<1x8x32xf32>
    tpu.vector_store %arg10[%c0_14, %c0_15, %c0_16], %13 {strides = array<i32>} : memref<2x8x32xf32, #tpu.memory_space<vmem>>, vector<1x8x32xf32>,
    %c0_17 = arith.constant 0 : index
    %c0_18 = arith.constant 0 : index
    %c0_19 = arith.constant 0 : index
    %14 = vector.load %arg2[%c0_17, %c0_18, %c0_19] : memref<8x2x32xf32, #tpu.memory_space<vmem>>, vector<8x1x32xf32>
    %15 = vector.shape_cast %14 : vector<8x1x32xf32> to vector<8x32xf32>
    %cst_20 = arith.constant dense<0.000000e+00> : vector<8x32xf32>
    %16 = tpu.matmul %15, %1, %cst_20 {dimension_numbers = #tpu.dot_dimension_numbers<[1], [0], [0], [1], [0, 0, 1, 1], [], []>} : vector<8x32xf32>, vector<32x32xf32>, vector<8x32xf32> -> vector<8x32xf32>
    %17 = vector.broadcast %4 : vector<1x32xf32> to vector<8x32xf32>
    %18 = arith.addf %16, %17 : vector<8x32xf32>
    %c0_21 = arith.constant 0 : index
    %c0_22 = arith.constant 0 : index
    %c0_23 = arith.constant 0 : index
    %19 = vector.load %arg11[%c0_21, %c0_22, %c0_23] : memref<2x8x32xf32, #tpu.memory_space<vmem>>, vector<1x8x32xf32>
    %20 = vector.shape_cast %19 : vector<1x8x32xf32> to vector<8x32xf32>
    %21 = vector.shape_cast %18 : vector<8x32xf32> to vector<1x8x32xf32>
    tpu.vector_store %arg11[%c0_21, %c0_22, %c0_23], %21 {strides = array<i32>} : memref<2x8x32xf32, #tpu.memory_space<vmem>>, vector<1x8x32xf32>,
    %c0_24 = arith.constant 0 : index
    %c0_25 = arith.constant 0 : index
    %c0_26 = arith.constant 0 : index
    %22 = vector.load %arg3[%c0_24, %c0_25, %c0_26] : memref<8x2x32xf32, #tpu.memory_space<vmem>>, vector<8x1x32xf32>
    %23 = vector.shape_cast %22 : vector<8x1x32xf32> to vector<8x32xf32>
    %cst_27 = arith.constant dense<0.000000e+00> : vector<8x32xf32>
    %24 = tpu.matmul %23, %2, %cst_27 {dimension_numbers = #tpu.dot_dimension_numbers<[1], [0], [0], [1], [0, 0, 1, 1], [], []>} : vector<8x32xf32>, vector<32x32xf32>, vector<8x32xf32> -> vector<8x32xf32>
    %25 = vector.broadcast %5 : vector<1x32xf32> to vector<8x32xf32>
    %26 = arith.addf %24, %25 : vector<8x32xf32>
    %c0_28 = arith.constant 0 : index
    %c0_29 = arith.constant 0 : index
    %c0_30 = arith.constant 0 : index
    %27 = vector.load %arg12[%c0_28, %c0_29, %c0_30] : memref<2x8x32xf32, #tpu.memory_space<vmem>>, vector<1x8x32xf32>
    %28 = vector.shape_cast %27 : vector<1x8x32xf32> to vector<8x32xf32>
    %29 = vector.shape_cast %26 : vector<8x32xf32> to vector<1x8x32xf32>
    tpu.vector_store %arg12[%c0_28, %c0_29, %c0_30], %29 {strides = array<i32>} : memref<2x8x32xf32, #tpu.memory_space<vmem>>, vector<1x8x32xf32>,
    %c0_31 = arith.constant 0 : index
    %c1 = arith.constant 1 : index
    %c0_32 = arith.constant 0 : index
    %30 = vector.load %arg1[%c0_31, %c1, %c0_32] : memref<8x2x32xf32, #tpu.memory_space<vmem>>, vector<8x1x32xf32>
    %31 = vector.shape_cast %30 : vector<8x1x32xf32> to vector<8x32xf32>
    %cst_33 = arith.constant dense<0.000000e+00> : vector<8x32xf32>
    %32 = tpu.matmul %31, %0, %cst_33 {dimension_numbers = #tpu.dot_dimension_numbers<[1], [0], [0], [1], [0, 0, 1, 1], [], []>} : vector<8x32xf32>, vector<32x32xf32>, vector<8x32xf32> -> vector<8x32xf32>
    %33 = vector.broadcast %3 : vector<1x32xf32> to vector<8x32xf32>
    %34 = arith.addf %32, %33 : vector<8x32xf32>
    %c1_34 = arith.constant 1 : index
    %c0_35 = arith.constant 0 : index
    %c0_36 = arith.constant 0 : index
    %35 = vector.load %arg10[%c1_34, %c0_35, %c0_36] : memref<2x8x32xf32, #tpu.memory_space<vmem>>, vector<1x8x32xf32>
    %36 = vector.shape_cast %35 : vector<1x8x32xf32> to vector<8x32xf32>
    %37 = vector.shape_cast %34 : vector<8x32xf32> to vector<1x8x32xf32>
    tpu.vector_store %arg10[%c1_34, %c0_35, %c0_36], %37 {strides = array<i32>} : memref<2x8x32xf32, #tpu.memory_space<vmem>>, vector<1x8x32xf32>,
    %c0_37 = arith.constant 0 : index
    %c1_38 = arith.constant 1 : index
    %c0_39 = arith.constant 0 : index
    %38 = vector.load %arg2[%c0_37, %c1_38, %c0_39] : memref<8x2x32xf32, #tpu.memory_space<vmem>>, vector<8x1x32xf32>
    %39 = vector.shape_cast %38 : vector<8x1x32xf32> to vector<8x32xf32>
    %cst_40 = arith.constant dense<0.000000e+00> : vector<8x32xf32>
    %40 = tpu.matmul %39, %1, %cst_40 {dimension_numbers = #tpu.dot_dimension_numbers<[1], [0], [0], [1], [0, 0, 1, 1], [], []>} : vector<8x32xf32>, vector<32x32xf32>, vector<8x32xf32> -> vector<8x32xf32>
    %41 = vector.broadcast %4 : vector<1x32xf32> to vector<8x32xf32>
    %42 = arith.addf %40, %41 : vector<8x32xf32>
    %c1_41 = arith.constant 1 : index
    %c0_42 = arith.constant 0 : index
    %c0_43 = arith.constant 0 : index
    %43 = vector.load %arg11[%c1_41, %c0_42, %c0_43] : memref<2x8x32xf32, #tpu.memory_space<vmem>>, vector<1x8x32xf32>
    %44 = vector.shape_cast %43 : vector<1x8x32xf32> to vector<8x32xf32>
    %45 = vector.shape_cast %42 : vector<8x32xf32> to vector<1x8x32xf32>
    tpu.vector_store %arg11[%c1_41, %c0_42, %c0_43], %45 {strides = array<i32>} : memref<2x8x32xf32, #tpu.memory_space<vmem>>, vector<1x8x32xf32>,
    %c0_44 = arith.constant 0 : index
    %c1_45 = arith.constant 1 : index
    %c0_46 = arith.constant 0 : index
    %46 = vector.load %arg3[%c0_44, %c1_45, %c0_46] : memref<8x2x32xf32, #tpu.memory_space<vmem>>, vector<8x1x32xf32>
    %47 = vector.shape_cast %46 : vector<8x1x32xf32> to vector<8x32xf32>
    %cst_47 = arith.constant dense<0.000000e+00> : vector<8x32xf32>
    %48 = tpu.matmul %47, %2, %cst_47 {dimension_numbers = #tpu.dot_dimension_numbers<[1], [0], [0], [1], [0, 0, 1, 1], [], []>} : vector<8x32xf32>, vector<32x32xf32>, vector<8x32xf32> -> vector<8x32xf32>
    %49 = vector.broadcast %5 : vector<1x32xf32> to vector<8x32xf32>
    %50 = arith.addf %48, %49 : vector<8x32xf32>
    %c1_48 = arith.constant 1 : index
    %c0_49 = arith.constant 0 : index
    %c0_50 = arith.constant 0 : index
    %51 = vector.load %arg12[%c1_48, %c0_49, %c0_50] : memref<2x8x32xf32, #tpu.memory_space<vmem>>, vector<1x8x32xf32>
    %52 = vector.shape_cast %51 : vector<1x8x32xf32> to vector<8x32xf32>
    %53 = vector.shape_cast %50 : vector<8x32xf32> to vector<1x8x32xf32>
    tpu.vector_store %arg12[%c1_48, %c0_49, %c0_50], %53 {strides = array<i32>} : memref<2x8x32xf32, #tpu.memory_space<vmem>>, vector<1x8x32xf32>,
    return
  }
  func.func @transform_0(%arg0: i32) -> (i32, i32, i32) {
    %c0_i32 = arith.constant 0 : i32
    %c0_i32_0 = arith.constant 0 : i32
    %c0_i32_1 = arith.constant 0 : i32
    return %arg0, %c0_i32, %c0_i32_0 : i32, i32, i32
  }
  func.func @transform_1(%arg0: i32) -> (i32, i32, i32) {
    %c0_i32 = arith.constant 0 : i32
    %c0_i32_0 = arith.constant 0 : i32
    %c0_i32_1 = arith.constant 0 : i32
    return %arg0, %c0_i32, %c0_i32_0 : i32, i32, i32
  }
  func.func @transform_2(%arg0: i32) -> (i32, i32, i32) {
    %c0_i32 = arith.constant 0 : i32
    %c0_i32_0 = arith.constant 0 : i32
    %c0_i32_1 = arith.constant 0 : i32
    return %arg0, %c0_i32, %c0_i32_0 : i32, i32, i32
  }
  func.func @transform_3(%arg0: i32) -> (i32, i32) {
    %c0_i32 = arith.constant 0 : i32
    %c0_i32_0 = arith.constant 0 : i32
    %c0_i32_1 = arith.constant 0 : i32
    return %c0_i32, %c0_i32_0 : i32, i32
  }
  func.func @transform_4(%arg0: i32) -> (i32, i32) {
    %c0_i32 = arith.constant 0 : i32
    %c0_i32_0 = arith.constant 0 : i32
    %c0_i32_1 = arith.constant 0 : i32
    return %c0_i32, %c0_i32_0 : i32, i32
  }
  func.func @transform_5(%arg0: i32) -> (i32, i32) {
    %c0_i32 = arith.constant 0 : i32
    %c0_i32_0 = arith.constant 0 : i32
    %c0_i32_1 = arith.constant 0 : i32
    return %c0_i32, %c0_i32_0 : i32, i32
  }
  func.func @transform_6(%arg0: i32) -> (i32, i32) {
    %c0_i32 = arith.constant 0 : i32
    %c0_i32_0 = arith.constant 0 : i32
    %c0_i32_1 = arith.constant 0 : i32
    return %c0_i32, %c0_i32_0 : i32, i32
  }
  func.func @transform_7(%arg0: i32) -> (i32, i32) {
    %c0_i32 = arith.constant 0 : i32
    %c0_i32_0 = arith.constant 0 : i32
    %c0_i32_1 = arith.constant 0 : i32
    return %c0_i32, %c0_i32_0 : i32, i32
  }
  func.func @transform_8(%arg0: i32) -> (i32, i32) {
    %c0_i32 = arith.constant 0 : i32
    %c0_i32_0 = arith.constant 0 : i32
    %c0_i32_1 = arith.constant 0 : i32
    return %c0_i32, %c0_i32_0 : i32, i32
  }
  func.func @transform_9(%arg0: i32) -> (i32, i32, i32) {
    %c0_i32 = arith.constant 0 : i32
    %c0_i32_0 = arith.constant 0 : i32
    %c0_i32_1 = arith.constant 0 : i32
    return %c0_i32, %arg0, %c0_i32_0 : i32, i32, i32
  }
  func.func @transform_10(%arg0: i32) -> (i32, i32, i32) {
    %c0_i32 = arith.constant 0 : i32
    %c0_i32_0 = arith.constant 0 : i32
    %c0_i32_1 = arith.constant 0 : i32
    return %c0_i32, %arg0, %c0_i32_0 : i32, i32, i32
  }
  func.func @transform_11(%arg0: i32) -> (i32, i32, i32) {
    %c0_i32 = arith.constant 0 : i32
    %c0_i32_0 = arith.constant 0 : i32
    %c0_i32_1 = arith.constant 0 : i32
    return %c0_i32, %arg0, %c0_i32_0 : i32, i32, i32
  }
}

</mosaic_0001>

<llo_original>
// kernel: tpu_custom_call.1
$region0: #{tpu_custom_call.1}
  #allocation0 [shape = 'u32[]', space=smem, size = 0x4, offset = 0x4, fixed_abs, tag = 'smem constant byte address 0x4 - core index']
  #allocation1 [shape = 'u32[144,128]{1,0:T(1,128)}', space=vmem, size = 0x12000, scoped, tag = 'internal scratch']
  %s0 = inlined_call_operand.hbm [shape: f32[8,2,32], index: 0, kind: input, shape index: {}]
  %s1 = inlined_call_operand.hbm [shape: f32[8,2,32], index: 1, kind: input, shape index: {}]
  %s2 = inlined_call_operand.hbm [shape: f32[8,2,32], index: 2, kind: input, shape index: {}]
  %s3 = inlined_call_operand.hbm [shape: f32[32,32], index: 3, kind: input, shape index: {}]
  %s4 = inlined_call_operand.hbm [shape: f32[32,32], index: 4, kind: input, shape index: {}]
  %s5 = inlined_call_operand.hbm [shape: f32[32,32], index: 5, kind: input, shape index: {}]
  %s6 = inlined_call_operand.vmem [shape: f32[1,32], index: 6, kind: input, shape index: {}]
  %s7 = inlined_call_operand.vmem [shape: f32[1,32], index: 7, kind: input, shape index: {}]
  %s8 = inlined_call_operand.vmem [shape: f32[1,32], index: 8, kind: input, shape index: {}]
  %s9 = inlined_call_operand.hbm [shape: f32[2,8,32], index: 9, kind: output, shape index: {0}]
  %s10 = inlined_call_operand.hbm [shape: f32[2,8,32], index: 10, kind: output, shape index: {1}]
  %s11 = inlined_call_operand.hbm [shape: f32[2,8,32], index: 11, kind: output, shape index: {2}]
  %12 = xla_tuple %s9, %s10, %s11
  %s13 = sld [smem:[#allocation0]]
  $region86: #{tpu_custom_call.1} parent=0
    _
  %s15 = ssub.s32 1, %s13
  %s16 = scalar_select 0, %s15, %s13
  $region1: #{tpu_custom_call.1} parent=0
    #allocation2 [shape = 'u8[8192]{0}', space=vmem, size = 0x2000, scoped, tag = 'input window, operand 0, single buffered']
    #allocation3 [shape = 's32[1]{0}', space=sflag, size = 0x4, scoped, tag = 'scoped memory for tpu_custom_call.1']
    #allocation4 [shape = 's32[1]{0}', space=sflag, size = 0x4, scoped, tag = 'scoped memory for tpu_custom_call.1']
    #allocation5 [shape = 'u8[8192]{0}', space=vmem, size = 0x2000, scoped, tag = 'input window, operand 1, single buffered']
    #allocation6 [shape = 's32[1]{0}', space=sflag, size = 0x4, scoped, tag = 'scoped memory for tpu_custom_call.1']
    #allocation7 [shape = 'u8[8192]{0}', space=vmem, size = 0x2000, scoped, tag = 'input window, operand 2, single buffered']
    #allocation8 [shape = 'u8[16384]{0}', space=vmem, size = 0x4000, scoped, tag = 'input window, operand 3, single buffered']
    #allocation9 [shape = 's32[1]{0}', space=sflag, size = 0x4, scoped, tag = 'scoped memory for tpu_custom_call.1']
    #allocation10 [shape = 'u8[16384]{0}', space=vmem, size = 0x4000, scoped, tag = 'input window, operand 4, single buffered']
    #allocation11 [shape = 'u8[16384]{0}', space=vmem, size = 0x4000, scoped, tag = 'input window, operand 5, single buffered']
    #allocation12 [shape = 's32[1]{0}', space=sflag, size = 0x4, scoped, tag = 'scoped memory for tpu_custom_call.1']
    #allocation13 [shape = 'u8[8192]{0}', space=vmem, size = 0x2000, scoped, tag = 'output window, operand 0, single buffered']
    #allocation14 [shape = 'u8[8192]{0}', space=vmem, size = 0x2000, scoped, tag = 'output window, operand 1, single buffered']
    #allocation15 [shape = 's32[1]{0}', space=sflag, size = 0x4, scoped, tag = 'scoped memory for tpu_custom_call.1']
    #allocation16 [shape = 'u8[8192]{0}', space=vmem, size = 0x2000, scoped, tag = 'output window, operand 2, single buffered']
    %17 = vsyncpa [#allocation3], 0
    %18 = vsyncpa [#allocation6], 0
    %19 = vsyncpa [#allocation9], 0
    %20 = vsyncpa [#allocation12], 0
    %21 = vsyncpa [#allocation4], 0
    %22 = vsyncpa [#allocation15], 0
    // Predicated region
    $region2: #{tpu_custom_call.1} parent=1 // pred_check
      _
    $region3: #{tpu_custom_call.1} parent=1 // pred_check_branch
      %24 = sbr.rel (0) target = $region5
    $region4: #{tpu_custom_call.1} parent=1 // pred_region
      %s26 = ssub.s32 256, 256
      %27 = vsyncadd [#allocation3], %s26
      %s28 = sshll.u32 [#allocation2], 4
      %s29 = int_to_ptr.vmem [resolvable:$true] %s28
      %34 = dma.hbm_to_vmem [thread:$0]  %s0, 256, %s29, [#allocation3], 32, 32, 2
    $region5: #{tpu_custom_call.1} parent=1 // pred_fallthru
      _
    // Predicated region
    $region6: #{tpu_custom_call.1} parent=1 // pred_check
      _
    $region7: #{tpu_custom_call.1} parent=1 // pred_check_branch
      %36 = sbr.rel (0) target = $region9
    $region8: #{tpu_custom_call.1} parent=1 // pred_region
      %s38 = ssub.s32 256, 256
      %39 = vsyncadd [#allocation6], %s38
      %s40 = sshll.u32 [#allocation5], 4
      %s41 = int_to_ptr.vmem [resolvable:$true] %s40
      %46 = dma.hbm_to_vmem [thread:$0]  %s1, 256, %s41, [#allocation6], 32, 32, 2
    $region9: #{tpu_custom_call.1} parent=1 // pred_fallthru
      _
    // Predicated region
    $region10: #{tpu_custom_call.1} parent=1 // pred_check
      _
    $region11: #{tpu_custom_call.1} parent=1 // pred_check_branch
      %48 = sbr.rel (0) target = $region13
    $region12: #{tpu_custom_call.1} parent=1 // pred_region
      %s50 = ssub.s32 256, 256
      %51 = vsyncadd [#allocation6], %s50
      %s52 = sshll.u32 [#allocation7], 4
      %s53 = int_to_ptr.vmem [resolvable:$true] %s52
      %58 = dma.hbm_to_vmem [thread:$0]  %s2, 256, %s53, [#allocation6], 32, 32, 2
    $region13: #{tpu_custom_call.1} parent=1 // pred_fallthru
      _
    // Predicated region
    $region14: #{tpu_custom_call.1} parent=1 // pred_check
      _
    $region15: #{tpu_custom_call.1} parent=1 // pred_check_branch
      %60 = sbr.rel (0) target = $region17
    $region16: #{tpu_custom_call.1} parent=1 // pred_region
      %s62 = ssub.s32 512, 512
      %63 = vsyncadd [#allocation9], %s62
      %s64 = sshll.u32 [#allocation8], 4
      %s65 = int_to_ptr.vmem [resolvable:$true] %s64
      %70 = dma.hbm_to_vmem [thread:$0]  %s3, 512, %s65, [#allocation9], 128, 128, 8
    $region17: #{tpu_custom_call.1} parent=1 // pred_fallthru
      _
    // Predicated region
    $region18: #{tpu_custom_call.1} parent=1 // pred_check
      _
    $region19: #{tpu_custom_call.1} parent=1 // pred_check_branch
      %72 = sbr.rel (0) target = $region21
    $region20: #{tpu_custom_call.1} parent=1 // pred_region
      %s74 = ssub.s32 512, 512
      %75 = vsyncadd [#allocation9], %s74
      %s76 = sshll.u32 [#allocation10], 4
      %s77 = int_to_ptr.vmem [resolvable:$true] %s76
      %82 = dma.hbm_to_vmem [thread:$0]  %s4, 512, %s77, [#allocation9], 128, 128, 8
    $region21: #{tpu_custom_call.1} parent=1 // pred_fallthru
      _
    // Predicated region
    $region22: #{tpu_custom_call.1} parent=1 // pred_check
      _
    $region23: #{tpu_custom_call.1} parent=1 // pred_check_branch
      %84 = sbr.rel (0) target = $region25
    $region24: #{tpu_custom_call.1} parent=1 // pred_region
      %s86 = ssub.s32 512, 512
      %87 = vsyncadd [#allocation12], %s86
      %s88 = sshll.u32 [#allocation11], 4
      %s89 = int_to_ptr.vmem [resolvable:$true] %s88
      %94 = dma.hbm_to_vmem [thread:$0]  %s5, 512, %s89, [#allocation12], 128, 128, 8
    $region25: #{tpu_custom_call.1} parent=1 // pred_fallthru
      _
    // Predicated region
    $region26: #{tpu_custom_call.1} parent=1 // pred_check
      _
    $region27: #{tpu_custom_call.1} parent=1 // pred_check_branch
      %96 = sbr.rel (0) target = $region29
    $region28: #{tpu_custom_call.1} parent=1 // pred_region
      _
    $region29: #{tpu_custom_call.1} parent=1 // pred_fallthru
      _
    // Predicated region
    $region30: #{tpu_custom_call.1} parent=1 // pred_check
      _
    $region31: #{tpu_custom_call.1} parent=1 // pred_check_branch
      %98 = sbr.rel (0) target = $region33
    $region32: #{tpu_custom_call.1} parent=1 // pred_region
      _
    $region33: #{tpu_custom_call.1} parent=1 // pred_fallthru
      _
    // Predicated region
    $region34: #{tpu_custom_call.1} parent=1 // pred_check
      _
    $region35: #{tpu_custom_call.1} parent=1 // pred_check_branch
      %100 = sbr.rel (0) target = $region37
    $region36: #{tpu_custom_call.1} parent=1 // pred_region
      _
    $region37: #{tpu_custom_call.1} parent=1 // pred_fallthru
      _
    // Predicated region
    $region38: #{tpu_custom_call.1} parent=1 // pred_check
      _
    $region39: #{tpu_custom_call.1} parent=1 // pred_check_branch
      %102 = sbr.rel (0) target = $region41
    $region40: #{tpu_custom_call.1} parent=1 // pred_region
      %103 = dma.done [#allocation3], 256
    $region41: #{tpu_custom_call.1} parent=1 // pred_fallthru
      _
    // Predicated region
    $region42: #{tpu_custom_call.1} parent=1 // pred_check
      _
    $region43: #{tpu_custom_call.1} parent=1 // pred_check_branch
      %105 = sbr.rel (0) target = $region45
    $region44: #{tpu_custom_call.1} parent=1 // pred_region
      %106 = dma.done [#allocation6], 256
    $region45: #{tpu_custom_call.1} parent=1 // pred_fallthru
      _
    // Predicated region
    $region46: #{tpu_custom_call.1} parent=1 // pred_check
      _
    $region47: #{tpu_custom_call.1} parent=1 // pred_check_branch
      %108 = sbr.rel (0) target = $region49
    $region48: #{tpu_custom_call.1} parent=1 // pred_region
      %109 = dma.done [#allocation6], 256
    $region49: #{tpu_custom_call.1} parent=1 // pred_fallthru
      _
    // Predicated region
    $region50: #{tpu_custom_call.1} parent=1 // pred_check
      _
    $region51: #{tpu_custom_call.1} parent=1 // pred_check_branch
      %111 = sbr.rel (0) target = $region53
    $region52: #{tpu_custom_call.1} parent=1 // pred_region
      %112 = dma.done [#allocation9], 512
    $region53: #{tpu_custom_call.1} parent=1 // pred_fallthru
      _
    // Predicated region
    $region54: #{tpu_custom_call.1} parent=1 // pred_check
      _
    $region55: #{tpu_custom_call.1} parent=1 // pred_check_branch
      %114 = sbr.rel (0) target = $region57
    $region56: #{tpu_custom_call.1} parent=1 // pred_region
      %115 = dma.done [#allocation9], 512
    $region57: #{tpu_custom_call.1} parent=1 // pred_fallthru
      _
    // Predicated region
    $region58: #{tpu_custom_call.1} parent=1 // pred_check
      _
    $region59: #{tpu_custom_call.1} parent=1 // pred_check_branch
      %117 = sbr.rel (0) target = $region61
    $region60: #{tpu_custom_call.1} parent=1 // pred_region
      %118 = dma.done [#allocation12], 512
    $region61: #{tpu_custom_call.1} parent=1 // pred_fallthru
      _
    %v119 = vld [vmem:[#allocation8] sm:$0xff]
    %v120 = vld [vmem:[#allocation8 + $0x8] sm:$0xff]
    %v121 = vld [vmem:[#allocation8 + $0x10] sm:$0xff]
    %v122 = vld [vmem:[#allocation8 + $0x18] sm:$0xff]
    %v123 = vld [vmem:[#allocation10] sm:$0xff]
    %v124 = vld [vmem:[#allocation10 + $0x8] sm:$0xff]
    %v125 = vld [vmem:[#allocation10 + $0x10] sm:$0xff]
    %v126 = vld [vmem:[#allocation10 + $0x18] sm:$0xff]
    %v127 = vld [vmem:[#allocation11] sm:$0xff]
    %v128 = vld [vmem:[#allocation11 + $0x8] sm:$0xff]
    %v129 = vld [vmem:[#allocation11 + $0x10] sm:$0xff]
    %v130 = vld [vmem:[#allocation11 + $0x18] sm:$0xff]
    %v131 = vld [vmem:[%s6] sm:$0x1]
    %v132 = vld [vmem:[%s7] sm:$0x1]
    %v133 = vld [vmem:[%s8] sm:$0x1]
    %v134 = vld [vmem:[#allocation2] sm:$0x1]
    %v135 = vld [vmem:[#allocation2 + $0x2] sm:$0x1]
    %v136 = vld [vmem:[#allocation2 + $0x4] sm:$0x1]
    %v137 = vld [vmem:[#allocation2 + $0x6] sm:$0x1]
    %v138 = vld [vmem:[#allocation2 + $0x8] sm:$0x1]
    %v139 = vld [vmem:[#allocation2 + $0xa] sm:$0x1]
    %v140 = vld [vmem:[#allocation2 + $0xc] sm:$0x1]
    %v141 = vld [vmem:[#allocation2 + $0xe] sm:$0x1]
    %v143 = vlaneseq
    %v144 = vshrl.u32 %v143, 7
    %v145 = vsub.s32 0, %v144
    %v146 = vrot.slane %v131, %v145
    %v156 = vrot.slane %v135, 7
    %vm157 = vcmask 1041409
    %v158 = vsel %vm157, %v156, %v134
    %v159 = vrot.slane %v136, 6
    %vm160 = vcmask 1042434
    %v161 = vsel %vm160, %v159, %v158
    %v162 = vrot.slane %v137, 5
    %vm163 = vcmask 1043459
    %v164 = vsel %vm163, %v162, %v161
    %v165 = vrot.slane %v138, 4
    %vm166 = vcmask 1044484
    %v167 = vsel %vm166, %v165, %v164
    %v168 = vrot.slane %v139, 3
    %vm169 = vcmask 1045509
    %v170 = vsel %vm169, %v168, %v167
    %v171 = vrot.slane %v140, 2
    %vm172 = vcmask 1046534
    %v173 = vsel %vm172, %v171, %v170
    %v174 = vrot.slane %v141, 1
    %vm175 = vcmask 1047559
    %v176 = vsel %vm175, %v174, %v173
    %vm177 = vcmask 261120
    %v178 = vsel %vm177, %v176, 0
    %180 = vmatprep.subr.mxu0 0.0
    %181 = vmatpush1.msra.mxu0 0.0
    %182 = vmatprep.subr.mxu0 0.0
    %183 = vmatpush1.msra.mxu0 0.0
    %184 = vmatprep.subr.mxu0 0.0
    %185 = vmatpush1.msra.mxu0 0.0
    %186 = vmatprep.subr.mxu0 0.0
    %187 = vmatpush1.msra.mxu0 0.0
    %188 = vmatprep.subr.mxu0 0.0
    %189 = vmatpush1.msra.mxu0 0.0
    %190 = vmatprep.subr.mxu0 0.0
    %191 = vmatpush1.msra.mxu0 0.0
    %192 = vmatprep.subr.mxu0 0.0
    %193 = vmatpush1.msra.mxu0 0.0
    %194 = vmatprep.subr.mxu0 0.0
    %195 = vmatpush1.msra.mxu0 0.0
    %196 = vmatprep.subr.mxu0 0.0
    %197 = vmatpush1.msra.mxu0 0.0
    %198 = vmatprep.subr.mxu0 0.0
    %199 = vmatpush1.msra.mxu0 0.0
    %200 = vmatprep.subr.mxu0 0.0
    %201 = vmatpush1.msra.mxu0 0.0
    %202 = vmatprep.subr.mxu0 0.0
    %203 = vmatpush1.msra.mxu0 0.0
    %204 = vmatprep.subr.mxu0 0.0
    %205 = vmatpush1.msra.mxu0 %v122
    %206 = vmatprep.subr.mxu0 0.0
    %207 = vmatpush1.msra.mxu0 %v121
    %208 = vmatprep.subr.mxu0 0.0
    %209 = vmatpush1.msra.mxu0 %v120
    %210 = vmatprep.subr.mxu0 0.0
    %211 = vmatpush1.msra.mxu0 %v119
    %212 = vmatprep.subr.mxu0 0.0
    %213 = vmatpush2.msra.mxu0 0.0
    %214 = vmatprep.subr.mxu0 0.0
    %215 = vmatpush2.msra.mxu0 0.0
    %216 = vmatprep.subr.mxu0 0.0
    %217 = vmatpush2.msra.mxu0 0.0
    %218 = vmatprep.subr.mxu0 0.0
    %219 = vmatpush2.msra.mxu0 0.0
    %220 = vmatprep.subr.mxu0 0.0
    %221 = vmatpush2.msra.mxu0 0.0
    %222 = vmatprep.subr.mxu0 0.0
    %223 = vmatpush2.msra.mxu0 0.0
    %224 = vmatprep.subr.mxu0 0.0
    %225 = vmatpush2.msra.mxu0 0.0
    %226 = vmatprep.subr.mxu0 0.0
    %227 = vmatpush2.msra.mxu0 0.0
    %228 = vmatprep.subr.mxu0 0.0
    %229 = vmatpush2.msra.mxu0 0.0
    %230 = vmatprep.subr.mxu0 0.0
    %231 = vmatpush2.msra.mxu0 0.0
    %232 = vmatprep.subr.mxu0 0.0
    %233 = vmatpush2.msra.mxu0 0.0
    %234 = vmatprep.subr.mxu0 0.0
    %235 = vmatpush2.msra.mxu0 0.0
    %236 = vmatprep.subr.mxu0 0.0
    %237 = vmatpush2.msra.mxu0 0.0
    %238 = vmatprep.subr.mxu0 0.0
    %239 = vmatpush2.msra.mxu0 0.0
    %240 = vmatprep.subr.mxu0 0.0
    %241 = vmatpush2.msra.mxu0 0.0
    %242 = vmatprep.subr.mxu0 0.0
    %243 = vmatpush2.msra.mxu0 0.0
    %244 = vmatprep.mubr.f32.mxu0 0.0
    %245 = vmatmul.mubr.f32.gmra.mxu0 %v178
    %v246 = vpop.f32.mrf.mxu0
    %v247 = vadd.f32 %v146, %v246
    %v248 = vpop.f32.mrf.mxu0
    %249 = vdwg.mxu0
    %250 = vst.msk [vmem:[#allocation13] sm:$0xff] %vm177, %v247
    %v251 = vld [vmem:[#allocation5] sm:$0x1]
    %v252 = vld [vmem:[#allocation5 + $0x2] sm:$0x1]
    %v253 = vld [vmem:[#allocation5 + $0x4] sm:$0x1]
    %v254 = vld [vmem:[#allocation5 + $0x6] sm:$0x1]
    %v255 = vld [vmem:[#allocation5 + $0x8] sm:$0x1]
    %v256 = vld [vmem:[#allocation5 + $0xa] sm:$0x1]
    %v257 = vld [vmem:[#allocation5 + $0xc] sm:$0x1]
    %v258 = vld [vmem:[#allocation5 + $0xe] sm:$0x1]
    %v260 = vlaneseq
    %v261 = vshrl.u32 %v260, 7
    %v262 = vsub.s32 0, %v261
    %v263 = vrot.slane %v132, %v262
    %v273 = vrot.slane %v252, 7
    %v274 = vsel %vm157, %v273, %v251
    %v275 = vrot.slane %v253, 6
    %v276 = vsel %vm160, %v275, %v274
    %v277 = vrot.slane %v254, 5
    %v278 = vsel %vm163, %v277, %v276
    %v279 = vrot.slane %v255, 4
    %v280 = vsel %vm166, %v279, %v278
    %v281 = vrot.slane %v256, 3
    %v282 = vsel %vm169, %v281, %v280
    %v283 = vrot.slane %v257, 2
    %v284 = vsel %vm172, %v283, %v282
    %v285 = vrot.slane %v258, 1
    %v286 = vsel %vm175, %v285, %v284
    %v287 = vsel %vm177, %v286, 0
    %289 = vmatprep.subr.mxu0 0.0
    %290 = vmatpush1.msra.mxu0 0.0
    %291 = vmatprep.subr.mxu0 0.0
    %292 = vmatpush1.msra.mxu0 0.0
    %293 = vmatprep.subr.mxu0 0.0
    %294 = vmatpush1.msra.mxu0 0.0
    %295 = vmatprep.subr.mxu0 0.0
    %296 = vmatpush1.msra.mxu0 0.0
    %297 = vmatprep.subr.mxu0 0.0
    %298 = vmatpush1.msra.mxu0 0.0
    %299 = vmatprep.subr.mxu0 0.0
    %300 = vmatpush1.msra.mxu0 0.0
    %301 = vmatprep.subr.mxu0 0.0
    %302 = vmatpush1.msra.mxu0 0.0
    %303 = vmatprep.subr.mxu0 0.0
    %304 = vmatpush1.msra.mxu0 0.0
    %305 = vmatprep.subr.mxu0 0.0
    %306 = vmatpush1.msra.mxu0 0.0
    %307 = vmatprep.subr.mxu0 0.0
    %308 = vmatpush1.msra.mxu0 0.0
    %309 = vmatprep.subr.mxu0 0.0
    %310 = vmatpush1.msra.mxu0 0.0
    %311 = vmatprep.subr.mxu0 0.0
    %312 = vmatpush1.msra.mxu0 0.0
    %313 = vmatprep.subr.mxu0 0.0
    %314 = vmatpush1.msra.mxu0 %v126
    %315 = vmatprep.subr.mxu0 0.0
    %316 = vmatpush1.msra.mxu0 %v125
    %317 = vmatprep.subr.mxu0 0.0
    %318 = vmatpush1.msra.mxu0 %v124
    %319 = vmatprep.subr.mxu0 0.0
    %320 = vmatpush1.msra.mxu0 %v123
    %321 = vmatprep.subr.mxu0 0.0
    %322 = vmatpush2.msra.mxu0 0.0
    %323 = vmatprep.subr.mxu0 0.0
    %324 = vmatpush2.msra.mxu0 0.0
    %325 = vmatprep.subr.mxu0 0.0
    %326 = vmatpush2.msra.mxu0 0.0
    %327 = vmatprep.subr.mxu0 0.0
    %328 = vmatpush2.msra.mxu0 0.0
    %329 = vmatprep.subr.mxu0 0.0
    %330 = vmatpush2.msra.mxu0 0.0
    %331 = vmatprep.subr.mxu0 0.0
    %332 = vmatpush2.msra.mxu0 0.0
    %333 = vmatprep.subr.mxu0 0.0
    %334 = vmatpush2.msra.mxu0 0.0
    %335 = vmatprep.subr.mxu0 0.0
    %336 = vmatpush2.msra.mxu0 0.0
    %337 = vmatprep.subr.mxu0 0.0
    %338 = vmatpush2.msra.mxu0 0.0
    %339 = vmatprep.subr.mxu0 0.0
    %340 = vmatpush2.msra.mxu0 0.0
    %341 = vmatprep.subr.mxu0 0.0
    %342 = vmatpush2.msra.mxu0 0.0
    %343 = vmatprep.subr.mxu0 0.0
    %344 = vmatpush2.msra.mxu0 0.0
    %345 = vmatprep.subr.mxu0 0.0
    %346 = vmatpush2.msra.mxu0 0.0
    %347 = vmatprep.subr.mxu0 0.0
    %348 = vmatpush2.msra.mxu0 0.0
    %349 = vmatprep.subr.mxu0 0.0
    %350 = vmatpush2.msra.mxu0 0.0
    %351 = vmatprep.subr.mxu0 0.0
    %352 = vmatpush2.msra.mxu0 0.0
    %353 = vmatprep.mubr.f32.mxu0 0.0
    %354 = vmatmul.mubr.f32.gmra.mxu0 %v287
    %v355 = vpop.f32.mrf.mxu0
    %v356 = vadd.f32 %v263, %v355
    %v357 = vpop.f32.mrf.mxu0
    %358 = vdwg.mxu0
    %359 = vst.msk [vmem:[#allocation14] sm:$0xff] %vm177, %v356
    %v360 = vld [vmem:[#allocation7] sm:$0x1]
    %v361 = vld [vmem:[#allocation7 + $0x2] sm:$0x1]
    %v362 = vld [vmem:[#allocation7 + $0x4] sm:$0x1]
    %v363 = vld [vmem:[#allocation7 + $0x6] sm:$0x1]
    %v364 = vld [vmem:[#allocation7 + $0x8] sm:$0x1]
    %v365 = vld [vmem:[#allocation7 + $0xa] sm:$0x1]
    %v366 = vld [vmem:[#allocation7 + $0xc] sm:$0x1]
    %v367 = vld [vmem:[#allocation7 + $0xe] sm:$0x1]
    %v369 = vlaneseq
    %v370 = vshrl.u32 %v369, 7
    %v371 = vsub.s32 0, %v370
    %v372 = vrot.slane %v133, %v371
    %v382 = vrot.slane %v361, 7
    %v383 = vsel %vm157, %v382, %v360
    %v384 = vrot.slane %v362, 6
    %v385 = vsel %vm160, %v384, %v383
    %v386 = vrot.slane %v363, 5
    %v387 = vsel %vm163, %v386, %v385
    %v388 = vrot.slane %v364, 4
    %v389 = vsel %vm166, %v388, %v387
    %v390 = vrot.slane %v365, 3
    %v391 = vsel %vm169, %v390, %v389
    %v392 = vrot.slane %v366, 2
    %v393 = vsel %vm172, %v392, %v391
    %v394 = vrot.slane %v367, 1
    %v395 = vsel %vm175, %v394, %v393
    %v396 = vsel %vm177, %v395, 0
    %398 = vmatprep.subr.mxu0 0.0
    %399 = vmatpush1.msra.mxu0 0.0
    %400 = vmatprep.subr.mxu0 0.0
    %401 = vmatpush1.msra.mxu0 0.0
    %402 = vmatprep.subr.mxu0 0.0
    %403 = vmatpush1.msra.mxu0 0.0
    %404 = vmatprep.subr.mxu0 0.0
    %405 = vmatpush1.msra.mxu0 0.0
    %406 = vmatprep.subr.mxu0 0.0
    %407 = vmatpush1.msra.mxu0 0.0
    %408 = vmatprep.subr.mxu0 0.0
    %409 = vmatpush1.msra.mxu0 0.0
    %410 = vmatprep.subr.mxu0 0.0
    %411 = vmatpush1.msra.mxu0 0.0
    %412 = vmatprep.subr.mxu0 0.0
    %413 = vmatpush1.msra.mxu0 0.0
    %414 = vmatprep.subr.mxu0 0.0
    %415 = vmatpush1.msra.mxu0 0.0
    %416 = vmatprep.subr.mxu0 0.0
    %417 = vmatpush1.msra.mxu0 0.0
    %418 = vmatprep.subr.mxu0 0.0
    %419 = vmatpush1.msra.mxu0 0.0
    %420 = vmatprep.subr.mxu0 0.0
    %421 = vmatpush1.msra.mxu0 0.0
    %422 = vmatprep.subr.mxu0 0.0
    %423 = vmatpush1.msra.mxu0 %v130
    %424 = vmatprep.subr.mxu0 0.0
    %425 = vmatpush1.msra.mxu0 %v129
    %426 = vmatprep.subr.mxu0 0.0
    %427 = vmatpush1.msra.mxu0 %v128
    %428 = vmatprep.subr.mxu0 0.0
    %429 = vmatpush1.msra.mxu0 %v127
    %430 = vmatprep.subr.mxu0 0.0
    %431 = vmatpush2.msra.mxu0 0.0
    %432 = vmatprep.subr.mxu0 0.0
    %433 = vmatpush2.msra.mxu0 0.0
    %434 = vmatprep.subr.mxu0 0.0
    %435 = vmatpush2.msra.mxu0 0.0
    %436 = vmatprep.subr.mxu0 0.0
    %437 = vmatpush2.msra.mxu0 0.0
    %438 = vmatprep.subr.mxu0 0.0
    %439 = vmatpush2.msra.mxu0 0.0
    %440 = vmatprep.subr.mxu0 0.0
    %441 = vmatpush2.msra.mxu0 0.0
    %442 = vmatprep.subr.mxu0 0.0
    %443 = vmatpush2.msra.mxu0 0.0
    %444 = vmatprep.subr.mxu0 0.0
    %445 = vmatpush2.msra.mxu0 0.0
    %446 = vmatprep.subr.mxu0 0.0
    %447 = vmatpush2.msra.mxu0 0.0
    %448 = vmatprep.subr.mxu0 0.0
    %449 = vmatpush2.msra.mxu0 0.0
    %450 = vmatprep.subr.mxu0 0.0
    %451 = vmatpush2.msra.mxu0 0.0
    %452 = vmatprep.subr.mxu0 0.0
    %453 = vmatpush2.msra.mxu0 0.0
    %454 = vmatprep.subr.mxu0 0.0
    %455 = vmatpush2.msra.mxu0 0.0
    %456 = vmatprep.subr.mxu0 0.0
    %457 = vmatpush2.msra.mxu0 0.0
    %458 = vmatprep.subr.mxu0 0.0
    %459 = vmatpush2.msra.mxu0 0.0
    %460 = vmatprep.subr.mxu0 0.0
    %461 = vmatpush2.msra.mxu0 0.0
    %462 = vmatprep.mubr.f32.mxu0 0.0
    %463 = vmatmul.mubr.f32.gmra.mxu0 %v396
    %v464 = vpop.f32.mrf.mxu0
    %v465 = vadd.f32 %v372, %v464
    %v466 = vpop.f32.mrf.mxu0
    %467 = vdwg.mxu0
    %468 = vst.msk [vmem:[#allocation16] sm:$0xff] %vm177, %v465
    %v469 = vld [vmem:[#allocation2 + $0x1] sm:$0x1]
    %v470 = vld [vmem:[#allocation2 + $0x3] sm:$0x1]
    %v471 = vld [vmem:[#allocation2 + $0x5] sm:$0x1]
    %v472 = vld [vmem:[#allocation2 + $0x7] sm:$0x1]
    %v473 = vld [vmem:[#allocation2 + $0x9] sm:$0x1]
    %v474 = vld [vmem:[#allocation2 + $0xb] sm:$0x1]
    %v475 = vld [vmem:[#allocation2 + $0xd] sm:$0x1]
    %v476 = vld [vmem:[#allocation2 + $0xf] sm:$0x1]
    %v485 = vrot.slane %v470, 7
    %v486 = vsel %vm157, %v485, %v469
    %v487 = vrot.slane %v471, 6
    %v488 = vsel %vm160, %v487, %v486
    %v489 = vrot.slane %v472, 5
    %v490 = vsel %vm163, %v489, %v488
    %v491 = vrot.slane %v473, 4
    %v492 = vsel %vm166, %v491, %v490
    %v493 = vrot.slane %v474, 3
    %v494 = vsel %vm169, %v493, %v492
    %v495 = vrot.slane %v475, 2
    %v496 = vsel %vm172, %v495, %v494
    %v497 = vrot.slane %v476, 1
    %v498 = vsel %vm175, %v497, %v496
    %v499 = vsel %vm177, %v498, 0
    %501 = vmatprep.subr.mxu0 0.0
    %502 = vmatpush1.msra.mxu0 0.0
    %503 = vmatprep.subr.mxu0 0.0
    %504 = vmatpush1.msra.mxu0 0.0
    %505 = vmatprep.subr.mxu0 0.0
    %506 = vmatpush1.msra.mxu0 0.0
    %507 = vmatprep.subr.mxu0 0.0
    %508 = vmatpush1.msra.mxu0 0.0
    %509 = vmatprep.subr.mxu0 0.0
    %510 = vmatpush1.msra.mxu0 0.0
    %511 = vmatprep.subr.mxu0 0.0
    %512 = vmatpush1.msra.mxu0 0.0
    %513 = vmatprep.subr.mxu0 0.0
    %514 = vmatpush1.msra.mxu0 0.0
    %515 = vmatprep.subr.mxu0 0.0
    %516 = vmatpush1.msra.mxu0 0.0
    %517 = vmatprep.subr.mxu0 0.0
    %518 = vmatpush1.msra.mxu0 0.0
    %519 = vmatprep.subr.mxu0 0.0
    %520 = vmatpush1.msra.mxu0 0.0
    %521 = vmatprep.subr.mxu0 0.0
    %522 = vmatpush1.msra.mxu0 0.0
    %523 = vmatprep.subr.mxu0 0.0
    %524 = vmatpush1.msra.mxu0 0.0
    %525 = vmatprep.subr.mxu0 0.0
    %526 = vmatpush1.msra.mxu0 %v122
    %527 = vmatprep.subr.mxu0 0.0
    %528 = vmatpush1.msra.mxu0 %v121
    %529 = vmatprep.subr.mxu0 0.0
    %530 = vmatpush1.msra.mxu0 %v120
    %531 = vmatprep.subr.mxu0 0.0
    %532 = vmatpush1.msra.mxu0 %v119
    %533 = vmatprep.subr.mxu0 0.0
    %534 = vmatpush2.msra.mxu0 0.0
    %535 = vmatprep.subr.mxu0 0.0
    %536 = vmatpush2.msra.mxu0 0.0
    %537 = vmatprep.subr.mxu0 0.0
    %538 = vmatpush2.msra.mxu0 0.0
    %539 = vmatprep.subr.mxu0 0.0
    %540 = vmatpush2.msra.mxu0 0.0
    %541 = vmatprep.subr.mxu0 0.0
    %542 = vmatpush2.msra.mxu0 0.0
    %543 = vmatprep.subr.mxu0 0.0
    %544 = vmatpush2.msra.mxu0 0.0
    %545 = vmatprep.subr.mxu0 0.0
    %546 = vmatpush2.msra.mxu0 0.0
    %547 = vmatprep.subr.mxu0 0.0
    %548 = vmatpush2.msra.mxu0 0.0
    %549 = vmatprep.subr.mxu0 0.0
    %550 = vmatpush2.msra.mxu0 0.0
    %551 = vmatprep.subr.mxu0 0.0
    %552 = vmatpush2.msra.mxu0 0.0
    %553 = vmatprep.subr.mxu0 0.0
    %554 = vmatpush2.msra.mxu0 0.0
    %555 = vmatprep.subr.mxu0 0.0
    %556 = vmatpush2.msra.mxu0 0.0
    %557 = vmatprep.subr.mxu0 0.0
    %558 = vmatpush2.msra.mxu0 0.0
    %559 = vmatprep.subr.mxu0 0.0
    %560 = vmatpush2.msra.mxu0 0.0
    %561 = vmatprep.subr.mxu0 0.0
    %562 = vmatpush2.msra.mxu0 0.0
    %563 = vmatprep.subr.mxu0 0.0
    %564 = vmatpush2.msra.mxu0 0.0
    %565 = vmatprep.mubr.f32.mxu0 0.0
    %566 = vmatmul.mubr.f32.gmra.mxu0 %v499
    %v567 = vpop.f32.mrf.mxu0
    %v568 = vadd.f32 %v146, %v567
    %v569 = vpop.f32.mrf.mxu0
    %570 = vdwg.mxu0
    %s571 = scalar_lea.vmem [#allocation13], 8
    %572 = vst.msk [vmem:[%s571] sm:$0xff] %vm177, %v568
    %v573 = vld [vmem:[#allocation5 + $0x1] sm:$0x1]
    %v574 = vld [vmem:[#allocation5 + $0x3] sm:$0x1]
    %v575 = vld [vmem:[#allocation5 + $0x5] sm:$0x1]
    %v576 = vld [vmem:[#allocation5 + $0x7] sm:$0x1]
    %v577 = vld [vmem:[#allocation5 + $0x9] sm:$0x1]
    %v578 = vld [vmem:[#allocation5 + $0xb] sm:$0x1]
    %v579 = vld [vmem:[#allocation5 + $0xd] sm:$0x1]
    %v580 = vld [vmem:[#allocation5 + $0xf] sm:$0x1]
    %v589 = vrot.slane %v574, 7
    %v590 = vsel %vm157, %v589, %v573
    %v591 = vrot.slane %v575, 6
    %v592 = vsel %vm160, %v591, %v590
    %v593 = vrot.slane %v576, 5
    %v594 = vsel %vm163, %v593, %v592
    %v595 = vrot.slane %v577, 4
    %v596 = vsel %vm166, %v595, %v594
    %v597 = vrot.slane %v578, 3
    %v598 = vsel %vm169, %v597, %v596
    %v599 = vrot.slane %v579, 2
    %v600 = vsel %vm172, %v599, %v598
    %v601 = vrot.slane %v580, 1
    %v602 = vsel %vm175, %v601, %v600
    %v603 = vsel %vm177, %v602, 0
    %605 = vmatprep.subr.mxu0 0.0
    %606 = vmatpush1.msra.mxu0 0.0
    %607 = vmatprep.subr.mxu0 0.0
    %608 = vmatpush1.msra.mxu0 0.0
    %609 = vmatprep.subr.mxu0 0.0
    %610 = vmatpush1.msra.mxu0 0.0
    %611 = vmatprep.subr.mxu0 0.0
    %612 = vmatpush1.msra.mxu0 0.0
    %613 = vmatprep.subr.mxu0 0.0
    %614 = vmatpush1.msra.mxu0 0.0
    %615 = vmatprep.subr.mxu0 0.0
    %616 = vmatpush1.msra.mxu0 0.0
    %617 = vmatprep.subr.mxu0 0.0
    %618 = vmatpush1.msra.mxu0 0.0
    %619 = vmatprep.subr.mxu0 0.0
    %620 = vmatpush1.msra.mxu0 0.0
    %621 = vmatprep.subr.mxu0 0.0
    %622 = vmatpush1.msra.mxu0 0.0
    %623 = vmatprep.subr.mxu0 0.0
    %624 = vmatpush1.msra.mxu0 0.0
    %625 = vmatprep.subr.mxu0 0.0
    %626 = vmatpush1.msra.mxu0 0.0
    %627 = vmatprep.subr.mxu0 0.0
    %628 = vmatpush1.msra.mxu0 0.0
    %629 = vmatprep.subr.mxu0 0.0
    %630 = vmatpush1.msra.mxu0 %v126
    %631 = vmatprep.subr.mxu0 0.0
    %632 = vmatpush1.msra.mxu0 %v125
    %633 = vmatprep.subr.mxu0 0.0
    %634 = vmatpush1.msra.mxu0 %v124
    %635 = vmatprep.subr.mxu0 0.0
    %636 = vmatpush1.msra.mxu0 %v123
    %637 = vmatprep.subr.mxu0 0.0
    %638 = vmatpush2.msra.mxu0 0.0
    %639 = vmatprep.subr.mxu0 0.0
    %640 = vmatpush2.msra.mxu0 0.0
    %641 = vmatprep.subr.mxu0 0.0
    %642 = vmatpush2.msra.mxu0 0.0
    %643 = vmatprep.subr.mxu0 0.0
    %644 = vmatpush2.msra.mxu0 0.0
    %645 = vmatprep.subr.mxu0 0.0
    %646 = vmatpush2.msra.mxu0 0.0
    %647 = vmatprep.subr.mxu0 0.0
    %648 = vmatpush2.msra.mxu0 0.0
    %649 = vmatprep.subr.mxu0 0.0
    %650 = vmatpush2.msra.mxu0 0.0
    %651 = vmatprep.subr.mxu0 0.0
    %652 = vmatpush2.msra.mxu0 0.0
    %653 = vmatprep.subr.mxu0 0.0
    %654 = vmatpush2.msra.mxu0 0.0
    %655 = vmatprep.subr.mxu0 0.0
    %656 = vmatpush2.msra.mxu0 0.0
    %657 = vmatprep.subr.mxu0 0.0
    %658 = vmatpush2.msra.mxu0 0.0
    %659 = vmatprep.subr.mxu0 0.0
    %660 = vmatpush2.msra.mxu0 0.0
    %661 = vmatprep.subr.mxu0 0.0
    %662 = vmatpush2.msra.mxu0 0.0
    %663 = vmatprep.subr.mxu0 0.0
    %664 = vmatpush2.msra.mxu0 0.0
    %665 = vmatprep.subr.mxu0 0.0
    %666 = vmatpush2.msra.mxu0 0.0
    %667 = vmatprep.subr.mxu0 0.0
    %668 = vmatpush2.msra.mxu0 0.0
    %669 = vmatprep.mubr.f32.mxu0 0.0
    %670 = vmatmul.mubr.f32.gmra.mxu0 %v603
    %v671 = vpop.f32.mrf.mxu0
    %v672 = vadd.f32 %v263, %v671
    %v673 = vpop.f32.mrf.mxu0
    %674 = vdwg.mxu0
    %s675 = scalar_lea.vmem [#allocation14], 8
    %676 = vst.msk [vmem:[%s675] sm:$0xff] %vm177, %v672
    %v677 = vld [vmem:[#allocation7 + $0x1] sm:$0x1]
    %v678 = vld [vmem:[#allocation7 + $0x3] sm:$0x1]
    %v679 = vld [vmem:[#allocation7 + $0x5] sm:$0x1]
    %v680 = vld [vmem:[#allocation7 + $0x7] sm:$0x1]
    %v681 = vld [vmem:[#allocation7 + $0x9] sm:$0x1]
    %v682 = vld [vmem:[#allocation7 + $0xb] sm:$0x1]
    %v683 = vld [vmem:[#allocation7 + $0xd] sm:$0x1]
    %v684 = vld [vmem:[#allocation7 + $0xf] sm:$0x1]
    %v693 = vrot.slane %v678, 7
    %v694 = vsel %vm157, %v693, %v677
    %v695 = vrot.slane %v679, 6
    %v696 = vsel %vm160, %v695, %v694
    %v697 = vrot.slane %v680, 5
    %v698 = vsel %vm163, %v697, %v696
    %v699 = vrot.slane %v681, 4
    %v700 = vsel %vm166, %v699, %v698
    %v701 = vrot.slane %v682, 3
    %v702 = vsel %vm169, %v701, %v700
    %v703 = vrot.slane %v683, 2
    %v704 = vsel %vm172, %v703, %v702
    %v705 = vrot.slane %v684, 1
    %v706 = vsel %vm175, %v705, %v704
    %v707 = vsel %vm177, %v706, 0
    %709 = vmatprep.subr.mxu0 0.0
    %710 = vmatpush1.msra.mxu0 0.0
    %711 = vmatprep.subr.mxu0 0.0
    %712 = vmatpush1.msra.mxu0 0.0
    %713 = vmatprep.subr.mxu0 0.0
    %714 = vmatpush1.msra.mxu0 0.0
    %715 = vmatprep.subr.mxu0 0.0
    %716 = vmatpush1.msra.mxu0 0.0
    %717 = vmatprep.subr.mxu0 0.0
    %718 = vmatpush1.msra.mxu0 0.0
    %719 = vmatprep.subr.mxu0 0.0
    %720 = vmatpush1.msra.mxu0 0.0
    %721 = vmatprep.subr.mxu0 0.0
    %722 = vmatpush1.msra.mxu0 0.0
    %723 = vmatprep.subr.mxu0 0.0
    %724 = vmatpush1.msra.mxu0 0.0
    %725 = vmatprep.subr.mxu0 0.0
    %726 = vmatpush1.msra.mxu0 0.0
    %727 = vmatprep.subr.mxu0 0.0
    %728 = vmatpush1.msra.mxu0 0.0
    %729 = vmatprep.subr.mxu0 0.0
    %730 = vmatpush1.msra.mxu0 0.0
    %731 = vmatprep.subr.mxu0 0.0
    %732 = vmatpush1.msra.mxu0 0.0
    %733 = vmatprep.subr.mxu0 0.0
    %734 = vmatpush1.msra.mxu0 %v130
    %735 = vmatprep.subr.mxu0 0.0
    %736 = vmatpush1.msra.mxu0 %v129
    %737 = vmatprep.subr.mxu0 0.0
    %738 = vmatpush1.msra.mxu0 %v128
    %739 = vmatprep.subr.mxu0 0.0
    %740 = vmatpush1.msra.mxu0 %v127
    %741 = vmatprep.subr.mxu0 0.0
    %742 = vmatpush2.msra.mxu0 0.0
    %743 = vmatprep.subr.mxu0 0.0
    %744 = vmatpush2.msra.mxu0 0.0
    %745 = vmatprep.subr.mxu0 0.0
    %746 = vmatpush2.msra.mxu0 0.0
    %747 = vmatprep.subr.mxu0 0.0
    %748 = vmatpush2.msra.mxu0 0.0
    %749 = vmatprep.subr.mxu0 0.0
    %750 = vmatpush2.msra.mxu0 0.0
    %751 = vmatprep.subr.mxu0 0.0
    %752 = vmatpush2.msra.mxu0 0.0
    %753 = vmatprep.subr.mxu0 0.0
    %754 = vmatpush2.msra.mxu0 0.0
    %755 = vmatprep.subr.mxu0 0.0
    %756 = vmatpush2.msra.mxu0 0.0
    %757 = vmatprep.subr.mxu0 0.0
    %758 = vmatpush2.msra.mxu0 0.0
    %759 = vmatprep.subr.mxu0 0.0
    %760 = vmatpush2.msra.mxu0 0.0
    %761 = vmatprep.subr.mxu0 0.0
    %762 = vmatpush2.msra.mxu0 0.0
    %763 = vmatprep.subr.mxu0 0.0
    %764 = vmatpush2.msra.mxu0 0.0
    %765 = vmatprep.subr.mxu0 0.0
    %766 = vmatpush2.msra.mxu0 0.0
    %767 = vmatprep.subr.mxu0 0.0
    %768 = vmatpush2.msra.mxu0 0.0
    %769 = vmatprep.subr.mxu0 0.0
    %770 = vmatpush2.msra.mxu0 0.0
    %771 = vmatprep.subr.mxu0 0.0
    %772 = vmatpush2.msra.mxu0 0.0
    %773 = vmatprep.mubr.f32.mxu0 0.0
    %774 = vmatmul.mubr.f32.gmra.mxu0 %v707
    %v775 = vpop.f32.mrf.mxu0
    %v776 = vadd.f32 %v372, %v775
    %v777 = vpop.f32.mrf.mxu0
    %778 = vdwg.mxu0
    %s779 = scalar_lea.vmem [#allocation16], 8
    %780 = vst.msk [vmem:[%s779] sm:$0xff] %vm177, %v776
    // Predicated region
    $region62: #{tpu_custom_call.1} parent=1 // pred_check
      _
    $region63: #{tpu_custom_call.1} parent=1 // pred_check_branch
      %782 = sbr.rel (0) target = $region65
    $region64: #{tpu_custom_call.1} parent=1 // pred_region
      %s784 = ssub.s32 256, 256
      %785 = vsyncadd [#allocation4], %s784
      %s786 = sshll.u32 [#allocation13], 4
      %s787 = int_to_ptr.vmem [resolvable:$true] %s786
      %792 = dma.vmem_to_hbm [thread:$0]  %s787, 256, %s9, [#allocation4], 128, 128, 8
    $region65: #{tpu_custom_call.1} parent=1 // pred_fallthru
      _
    // Predicated region
    $region66: #{tpu_custom_call.1} parent=1 // pred_check
      _
    $region67: #{tpu_custom_call.1} parent=1 // pred_check_branch
      %794 = sbr.rel (0) target = $region69
    $region68: #{tpu_custom_call.1} parent=1 // pred_region
      %s796 = ssub.s32 256, 256
      %797 = vsyncadd [#allocation15], %s796
      %s798 = sshll.u32 [#allocation14], 4
      %s799 = int_to_ptr.vmem [resolvable:$true] %s798
      %804 = dma.vmem_to_hbm [thread:$0]  %s799, 256, %s10, [#allocation15], 128, 128, 8
    $region69: #{tpu_custom_call.1} parent=1 // pred_fallthru
      _
    // Predicated region
    $region70: #{tpu_custom_call.1} parent=1 // pred_check
      _
    $region71: #{tpu_custom_call.1} parent=1 // pred_check_branch
      %806 = sbr.rel (0) target = $region73
    $region72: #{tpu_custom_call.1} parent=1 // pred_region
      %s808 = ssub.s32 256, 256
      %809 = vsyncadd [#allocation15], %s808
      %s810 = sshll.u32 [#allocation16], 4
      %s811 = int_to_ptr.vmem [resolvable:$true] %s810
      %816 = dma.vmem_to_hbm [thread:$0]  %s811, 256, %s11, [#allocation15], 128, 128, 8
    $region73: #{tpu_custom_call.1} parent=1 // pred_fallthru
      _
    // Predicated region
    $region74: #{tpu_custom_call.1} parent=1 // pred_check
      _
    $region75: #{tpu_custom_call.1} parent=1 // pred_check_branch
      %818 = sbr.rel (0) target = $region77
    $region76: #{tpu_custom_call.1} parent=1 // pred_region
      %819 = dma.done [#allocation4], 256
    $region77: #{tpu_custom_call.1} parent=1 // pred_fallthru
      _
    // Predicated region
    $region78: #{tpu_custom_call.1} parent=1 // pred_check
      _
    $region79: #{tpu_custom_call.1} parent=1 // pred_check_branch
      %821 = sbr.rel (0) target = $region81
    $region80: #{tpu_custom_call.1} parent=1 // pred_region
      %822 = dma.done [#allocation15], 256
    $region81: #{tpu_custom_call.1} parent=1 // pred_fallthru
      _
    // Predicated region
    $region82: #{tpu_custom_call.1} parent=1 // pred_check
      _
    $region83: #{tpu_custom_call.1} parent=1 // pred_check_branch
      %824 = sbr.rel (0) target = $region85
    $region84: #{tpu_custom_call.1} parent=1 // pred_region
      %825 = dma.done [#allocation15], 256
    $region85: #{tpu_custom_call.1} parent=1 // pred_fallthru
      _
    %826 = vsyncpa [#allocation3], 1
    %827 = vsyncpa [#allocation6], 1
    %828 = vsyncpa [#allocation9], 1
    %829 = vsyncpa [#allocation12], 1
    %830 = vsyncpa [#allocation4], 1
    %831 = vsyncpa [#allocation15], 1

</llo_original>
